<compile_context>
chip_gen: v5e
topology: v5e:2x2
jax: 0.10.0
libtpu: 0.0.40
codegen_flags: <defaults>
</compile_context>

<pallas_src>
import jax
import jax.numpy as jnp
from jax.experimental import pallas as pl
from jax.experimental.pallas import tpu as pltpu


def _copy_block_kernel(x_ref, o_ref):
    # x_ref, o_ref: (C_t, Do_t, Ho*Wo). Pure copy — all reorganization (subcube
    # gather + channel packing) is done by the BlockSpec index maps / DMA.
    o_ref[...] = x_ref[...]


def _divisors(n):
    return [d for d in range(1, n + 1) if n % d == 0]


def _pick_tiles(C, Do, row_bytes, target_bytes):
    """Pick (C_t, Do_t) giving the largest block <= target_bytes.

    Do_t is the second-minor block dim: it must be the full extent or a multiple
    of 8. C_t is a leading dim, so any divisor of C is legal.
    """
    do_cands = [d for d in _divisors(Do) if d == Do or d % 8 == 0]
    cands = [(ct * dt * row_bytes, ct, dt)
             for ct in _divisors(C) for dt in do_cands]
    fitting = [c for c in cands if c[0] <= target_bytes]
    _, c_t, do_t = max(fitting) if fitting else min(cands)
    return c_t, do_t


def stride_suppression(x, stride, *, target_block_bytes=4 * 1024 * 1024):
    """x: (N, C, D, H, W) -> (N, C*s0*s1*s2, D//s0, H//s1, W//s2)."""
    if isinstance(stride, int):
        stride = (stride, stride, stride)
    s0, s1, s2 = stride
    N, C, D, H, W = x.shape
    assert D % s0 == 0 and H % s1 == 0 and W % s2 == 0
    Do, Ho, Wo = D // s0, H // s1, W // s2
    HW = Ho * Wo
    Cout = C * s0 * s1 * s2

    # Single fused XLA copy: (N, C, D, H, W) -> (N, C, s2, s1, s0, Do, Ho*Wo).
    # This handles only the lane-dim deinterleave; everything else happens inside
    # the pallas_call via DMA.
    x8 = x.reshape(N, C, Do, s0, Ho, s1, Wo, s2)
    xt = jnp.transpose(x8, (0, 1, 7, 5, 3, 2, 4, 6)).reshape(
        N, C, s2, s1, s0, Do, HW)

    itemsize = x.dtype.itemsize
    C_t, Do_t = _pick_tiles(C, Do, HW * itemsize, target_block_bytes)
    block_bytes = C_t * Do_t * HW * itemsize

    grid = (N, s2, s1, s0, C // C_t, Do // Do_t)

    in_spec = pl.BlockSpec(
        (None, C_t, None, None, None, Do_t, HW),
        lambda n, z, y, xo, ci, di: (n, ci, z, y, xo, di, 0),
    )
    out_spec = pl.BlockSpec(
        (None, None, None, None, C_t, Do_t, HW),
        lambda n, z, y, xo, ci, di: (n, z, y, xo, ci, di, 0),
    )

    # in + out blocks, each double-buffered -> 4*block_bytes; give ~2.5x(in+out)
    # headroom, clamped to a level that is safe on v5e/v6e/v7x scoped VMEM.
    vmem_limit = int(min(32 * 2**20, max(8 * 2**20, 5 * block_bytes)))

    out7 = pl.pallas_call(
        _copy_block_kernel,
        out_shape=jax.ShapeDtypeStruct((N, s2, s1, s0, C, Do, HW), x.dtype),
        grid=grid,
        in_specs=[in_spec],
        out_specs=out_spec,
        compiler_params=pltpu.CompilerParams(
            dimension_semantics=("parallel",) * len(grid),
            vmem_limit_bytes=vmem_limit,
        ),
    )(xt)

    # Metadata-only reshape back to NCDHW. Channel index = (z*s1*s0 + y*s0 + x)*C + c,
    # exactly matching torch.cat(create_subcubes(...), dim=1) ordering.
    return out7.reshape(N, Cout, Do, Ho, Wo)


def stride_suppression_ref(x, stride):
    """Pure-JAX reference mirroring the PyTorch module exactly."""
    if isinstance(stride, int):
        stride = (stride, stride, stride)
    subs = []
    for z in range(stride[2]):
        for y in range(stride[1]):
            for xo in range(stride[0]):
                subs.append(x[..., xo::stride[0], y::stride[1], z::stride[2]])
    return jnp.concatenate(subs, axis=1)


if __name__ == "__main__":
    key = jax.random.PRNGKey(0)
    N, C, D, H, W = 2, 4, 8, 8, 8
    stride = 2
    x = jax.random.normal(key, (N, C, D, H, W), dtype=jnp.float32)

    out = jax.jit(lambda a: stride_suppression(a, stride))(x)
    out = jax.block_until_ready(out)

    ref = stride_suppression_ref(x, stride)
    assert out.shape == ref.shape == (
        N, C * stride**3, D // stride, H // stride, W // stride)
    assert bool(jnp.array_equal(out, ref))

    print("KERNEL_OK")
</pallas_src>

<mosaic_0001>
module attributes {stable_mosaic.version = 11 : i64} {
  func.func @_copy_block_kernel(%arg0: i32, %arg1: i32, %arg2: i32, %arg3: i32, %arg4: i32, %arg5: i32, %arg6: memref<1x4x1x1x1x4x16xf32, #tpu.memory_space<vmem>>, %arg7: memref<1x1x1x1x4x4x16xf32, #tpu.memory_space<vmem>>) attributes {dimension_semantics = [#tpu.dimension_semantics<parallel>, #tpu.dimension_semantics<parallel>, #tpu.dimension_semantics<parallel>, #tpu.dimension_semantics<parallel>, #tpu.dimension_semantics<parallel>, #tpu.dimension_semantics<parallel>], iteration_bounds = array<i64: 2, 2, 2, 2, 1, 1>, scalar_prefetch = 0 : i64, scratch_operands = 0 : i64, tpu.core_type = #tpu.core_type<tc>, window_params = [{transform_indices = @transform_0, window_bounds = array<i64: 1, 4, 1, 1, 1, 4, 16>}, {transform_indices = @transform_1, window_bounds = array<i64: 1, 1, 1, 1, 4, 4, 16>}]} {
    %c0 = arith.constant 0 : index
    %c0_0 = arith.constant 0 : index
    %c0_1 = arith.constant 0 : index
    %c0_2 = arith.constant 0 : index
    %c0_3 = arith.constant 0 : index
    %c0_4 = arith.constant 0 : index
    %c0_5 = arith.constant 0 : index
    %0 = vector.load %arg6[%c0, %c0_0, %c0_1, %c0_2, %c0_3, %c0_4, %c0_5] : memref<1x4x1x1x1x4x16xf32, #tpu.memory_space<vmem>>, vector<1x4x1x1x1x4x16xf32>
    %1 = vector.shape_cast %0 : vector<1x4x1x1x1x4x16xf32> to vector<4x4x16xf32>
    %c0_6 = arith.constant 0 : index
    %c0_7 = arith.constant 0 : index
    %c0_8 = arith.constant 0 : index
    %c0_9 = arith.constant 0 : index
    %c0_10 = arith.constant 0 : index
    %c0_11 = arith.constant 0 : index
    %c0_12 = arith.constant 0 : index
    %2 = vector.load %arg7[%c0_6, %c0_7, %c0_8, %c0_9, %c0_10, %c0_11, %c0_12] : memref<1x1x1x1x4x4x16xf32, #tpu.memory_space<vmem>>, vector<1x1x1x1x4x4x16xf32>
    %3 = vector.shape_cast %2 : vector<1x1x1x1x4x4x16xf32> to vector<4x4x16xf32>
    %4 = vector.shape_cast %1 : vector<4x4x16xf32> to vector<1x1x1x1x4x4x16xf32>
    tpu.vector_store %arg7[%c0_6, %c0_7, %c0_8, %c0_9, %c0_10, %c0_11, %c0_12], %4 {strides = array<i32>} : memref<1x1x1x1x4x4x16xf32, #tpu.memory_space<vmem>>, vector<1x1x1x1x4x4x16xf32>,
    return
  }
  func.func @transform_0(%arg0: i32, %arg1: i32, %arg2: i32, %arg3: i32, %arg4: i32, %arg5: i32) -> (i32, i32, i32, i32, i32, i32, i32) {
    %c0_i32 = arith.constant 0 : i32
    %c0_i32_0 = arith.constant 0 : i32
    return %arg0, %arg4, %arg1, %arg2, %arg3, %arg5, %c0_i32 : i32, i32, i32, i32, i32, i32, i32
  }
  func.func @transform_1(%arg0: i32, %arg1: i32, %arg2: i32, %arg3: i32, %arg4: i32, %arg5: i32) -> (i32, i32, i32, i32, i32, i32, i32) {
    %c0_i32 = arith.constant 0 : i32
    %c0_i32_0 = arith.constant 0 : i32
    return %arg0, %arg1, %arg2, %arg3, %arg4, %arg5, %c0_i32 : i32, i32, i32, i32, i32, i32, i32
  }
}

</mosaic_0001>

<llo_original>
// kernel: _lambda_.1
$region0: #{_lambda_.1}
  #allocation0 [shape = 'u32[]', space=smem, size = 0x4, offset = 0x4, fixed_abs, tag = 'smem constant byte address 0x4 - core index']
  #allocation1 [shape = 'u32[72,128]{1,0:T(1,128)}', space=vmem, size = 0x9000, scoped, tag = 'internal scratch']
  %s0 = inlined_call_operand.vmem [shape: f32[2,4,2,2,2,4,16], index: 0, kind: input, shape index: {}]
  %s1 = inlined_call_operand.vmem [shape: f32[2,2,2,2,4,4,16], index: 1, kind: output, shape index: {}]
  %s2 = sld [smem:[#allocation0]]
  $region78: #{_lambda_.1} parent=0
    _
  %s4 = ssub.s32 1, %s2
  %s5 = scalar_select 0, %s4, %s2
  $region1: #{_lambda_.1} parent=0
    #allocation2 [shape = 'u8[16384]{0}', space=vmem, size = 0x4000, scoped, tag = 'input window, operand 0']
    loop: start=0, step=1, limit=18
    $region2: #{_lambda_.1} parent=1 // loop_pre_header
      _
    $region3: #{_lambda_.1} parent=1 // loop_header
      %s7 = sphi 0, %s11
      %p8 = scmp.ge.s32.totalorder %s7, 18
      %s14 = sphi 0, %s54
      %s15 = sphi 0, %s50
      %s16 = sphi 0, %s46
      %s17 = sphi 0, %s42
      %s18 = sphi 0, %s38
      %s19 = sphi 0, %s34
      %s20 = sphi 0, %s14
      %s21 = sphi 0, %s15
      %s22 = sphi 0, %s16
      %s23 = sphi 0, %s17
      %s24 = sphi 0, %s18
      %s25 = sphi 0, %s19
      %s26 = sphi 0, %s20
      %s27 = sphi 0, %s21
      %s28 = sphi 0, %s22
      %s29 = sphi 0, %s23
      %s30 = sphi 0, %s24
      %s31 = sphi 0, %s25
      %s67 = sphi 0, %s69
      %s70 = sphi 0, %s67
      %s71 = sphi 0, %s70
      %s87 = sphi 0, %s71
      %s103 = sphi 0, %s105
      %s106 = sphi 0, %s103
      %s107 = sphi 0, %s106
      %s123 = sphi 0, %s107
    $region4: #{_lambda_.1} parent=1 // loop_header_branch
      %10 = sbr.rel (%p8) target = $region8
    $region5: #{_lambda_.1} parent=1 // loop_body
      %s12 = ssub.s32 %s7, 1
      %s13 = ssub.s32 %s7, 2
      %s32 = sadd.s32 1, %s19
      %p33 = scmp.ge.s32.totalorder %s32, 1
      %s34 = scalar_select %p33, 0, %s32
      %s35 = sadd.s32 1, %s18
      %s36 = scalar_select %p33, %s35, %s18
      %p37 = scmp.ge.s32.totalorder %s36, 1
      %s38 = scalar_select %p37, 0, %s36
      %s39 = sadd.s32 1, %s17
      %s40 = scalar_select %p37, %s39, %s17
      %p41 = scmp.ge.s32.totalorder %s40, 2
      %s42 = scalar_select %p41, 0, %s40
      %s43 = sadd.s32 1, %s16
      %s44 = scalar_select %p41, %s43, %s16
      %p45 = scmp.ge.s32.totalorder %s44, 2
      %s46 = scalar_select %p45, 0, %s44
      %s47 = sadd.s32 1, %s15
      %s48 = scalar_select %p45, %s47, %s15
      %p49 = scmp.ge.s32.totalorder %s48, 2
      %s50 = scalar_select %p49, 0, %s48
      %s51 = sadd.s32 1, %s14
      %s52 = scalar_select %p49, %s51, %s14
      %p53 = scmp.ge.s32.totalorder %s52, 2
      %s54 = scalar_select %p53, 0, %s52
      %s55 = ssub.s32 %s14, %s54
      %s56 = ssub.s32 %s18, %s38
      %s57 = sor.u32 %s55, %s56
      %s58 = ssub.s32 %s15, %s50
      %s59 = sor.u32 %s57, %s58
      %s60 = ssub.s32 %s16, %s46
      %s61 = sor.u32 %s59, %s60
      %s62 = ssub.s32 %s17, %s42
      %s63 = sor.u32 %s61, %s62
      %s64 = ssub.s32 %s19, %s34
      %s65 = sor.u32 %s63, %s64
      %p66 = scmp.eq.s32.totalorder %s65, 0
      %s68 = sadd.s32 %s67, 1
      %s69 = scalar_select %p66, %s67, %s68
      %p72 = pneg %p66
      %p73 = scmp.eq.s32.totalorder %s7, 15
      %p74 = por %p72, %p73
      %p75 = scmp.ne.s32.totalorder %s67, %s70
      %p76 = scmp.eq.s32.totalorder %s7, 0
      %p77 = por %p75, %p76
      %p78 = scmp.ne.s32.totalorder %s67, %s70
      %p79 = scmp.eq.s32.totalorder %s12, 15
      %p80 = por %p78, %p79
      %p81 = scmp.ne.s32.totalorder %s70, %s71
      %p82 = scmp.eq.s32.totalorder %s12, 0
      %p83 = por %p81, %p82
      %p84 = scmp.ne.s32.totalorder %s70, %s71
      %p85 = scmp.eq.s32.totalorder %s13, 15
      %p86 = por %p84, %p85
      %p88 = scmp.ne.s32.totalorder %s71, %s87
      %p89 = scmp.eq.s32.totalorder %s13, 0
      %p90 = por %p88, %p89
      %s91 = ssub.s32 %s14, %s54
      %s92 = ssub.s32 %s15, %s50
      %s93 = sor.u32 %s91, %s92
      %s94 = ssub.s32 %s16, %s46
      %s95 = sor.u32 %s93, %s94
      %s96 = ssub.s32 %s17, %s42
      %s97 = sor.u32 %s95, %s96
      %s98 = ssub.s32 %s18, %s38
      %s99 = sor.u32 %s97, %s98
      %s100 = ssub.s32 %s19, %s34
      %s101 = sor.u32 %s99, %s100
      %p102 = scmp.eq.s32.totalorder %s101, 0
      %s104 = sadd.s32 %s103, 1
      %s105 = scalar_select %p102, %s103, %s104
      %p108 = pneg %p102
      %p109 = scmp.eq.s32.totalorder %s7, 15
      %p110 = por %p108, %p109
      %p111 = scmp.ne.s32.totalorder %s103, %s106
      %p112 = scmp.eq.s32.totalorder %s7, 0
      %p113 = por %p111, %p112
      %p114 = scmp.ne.s32.totalorder %s103, %s106
      %p115 = scmp.eq.s32.totalorder %s12, 15
      %p116 = por %p114, %p115
      %p117 = scmp.ne.s32.totalorder %s106, %s107
      %p118 = scmp.eq.s32.totalorder %s12, 0
      %p119 = por %p117, %p118
      %p120 = scmp.ne.s32.totalorder %s106, %s107
      %p121 = scmp.eq.s32.totalorder %s13, 15
      %p122 = por %p120, %p121
      %p124 = scmp.ne.s32.totalorder %s107, %s123
      %p125 = scmp.eq.s32.totalorder %s13, 0
      %p126 = por %p124, %p125
      %p127 = scmp.le.s32.totalorder 1, %s7
      %p128 = scmp.lt.s32.totalorder %s7, 17
      %p129 = pnand %p127, %p128
      %p130 = pneg %p129
      // Predicated region
      $region9: #{_lambda_.1} parent=5 // pred_check
        _
      $region10: #{_lambda_.1} parent=5 // pred_check_branch
        %132 = sbr.rel (%p129) target = $region12
      $region11: #{_lambda_.1} parent=5 // pred_region
        %s133 = ssub.s32 %s7, 1
      $region12: #{_lambda_.1} parent=5 // pred_fallthru
        _
      %p134 = scmp.lt.s32.totalorder %s7, 16
      // Predicated region
      $region13: #{_lambda_.1} parent=5 // pred_check
        %p135 = pneg %p134
      $region14: #{_lambda_.1} parent=5 // pred_check_branch
        %137 = sbr.rel (%p135) target = $region16
      $region15: #{_lambda_.1} parent=5 // pred_region
        // Predicated region
        $region17: #{_lambda_.1} parent=15 // pred_check
          %p138 = pneg %p77
        $region18: #{_lambda_.1} parent=15 // pred_check_branch
          %140 = sbr.rel (%p138) target = $region20
        $region19: #{_lambda_.1} parent=15 // pred_region
          %s141 = sand.u32 %s67, 1
          %s142 = sand.u32 %s67, 1
          %s143 = smul.addr %s142, 16
          %s144 = scalar_lea.vmem [#allocation2], %s143
          %s145 = smul.u32 4, %s18
          %s146 = sadd.s32 %s19, %s17
          %s147 = smul.addr %s16, 2
          %s148 = sadd.s32 %s146, %s147
          %s149 = smul.addr %s15, 4
          %s150 = sadd.s32 %s148, %s149
          %s151 = smul.addr %s145, 8
          %s152 = sadd.s32 %s150, %s151
          %s153 = smul.addr %s14, 32
          %s154 = sadd.s32 %s152, %s153
          %s155 = smul.addr %s154, 4
          %s156 = scalar_lea.vmem %s0, %s155
          // Predicated region
          $region21: #{_lambda_.1} parent=19 // pred_check
            _
          $region22: #{_lambda_.1} parent=19 // pred_check_branch
            %158 = sbr.rel (0) target = $region24
          $region23: #{_lambda_.1} parent=19 // pred_region
            // Predicated region
            $region25: #{_lambda_.1} parent=23 // pred_check
              _
            $region26: #{_lambda_.1} parent=23 // pred_check_branch
              %160 = sbr.rel target = $region28
            $region27: #{_lambda_.1} parent=23 // pred_region
              // Predicated region
              $region40: #{_lambda_.1} parent=27 // pred_check
                _
              $region41: #{_lambda_.1} parent=27 // pred_check_branch
                %182 = sbr.rel (0) target = $region43
              $region42: #{_lambda_.1} parent=27 // pred_region
                loop: start=0, step=1, limit=1
                $region44: #{_lambda_.1} parent=42 // loop_pre_header
                  _
                $region45: #{_lambda_.1} parent=42 // loop_header
                  %s184 = sphi 0, %s188
                  %p185 = scmp.ge.s32.totalorder %s184, 1
                  %s189 = sphi %s156, %s156
                  %s190 = sphi %s144, %s144
                $region46: #{_lambda_.1} parent=42 // loop_header_branch
                  %187 = sbr.rel (%p185) target = $region50
                $region47: #{_lambda_.1} parent=42 // loop_body
                  _
                $region48: #{_lambda_.1} parent=42 // loop_footer
                  %s188 = sadd.s32 1, %s184
                $region49: #{_lambda_.1} parent=42 // loop_footer_branch
                  %183 = sbr.rel target = $region45
                $region50: #{_lambda_.1} parent=42 // loop_exit
                  _
                %s192 = ssub.s32 16, 1
                loop: start=0, step=1, limit=1
                $region51: #{_lambda_.1} parent=42 // loop_pre_header
                  _
                $region52: #{_lambda_.1} parent=42 // loop_header
                  %s194 = sphi 0, %s198
                  %p195 = scmp.ge.s32.totalorder %s194, 1
                  %s199 = sphi %s156, %s156
                  %s200 = sphi %s144, %s144
                $region53: #{_lambda_.1} parent=42 // loop_header_branch
                  %197 = sbr.rel (%p195) target = $region57
                $region54: #{_lambda_.1} parent=42 // loop_body
                  %v201 = vld [vmem:[%s199] sm:%s192]
                  %202 = vst [vmem:[%s200] sm:%s192] %v201
                  %v203 = vld [vmem:[%s199 + $0x20] sm:%s192]
                  %204 = vst [vmem:[%s200 + $0x4] sm:%s192] %v203
                  %v205 = vld [vmem:[%s199 + $0x40] sm:%s192]
                  %206 = vst [vmem:[%s200 + $0x8] sm:%s192] %v205
                  %v207 = vld [vmem:[%s199 + $0x60] sm:%s192]
                  %208 = vst [vmem:[%s200 + $0xc] sm:%s192] %v207
                $region55: #{_lambda_.1} parent=42 // loop_footer
                  %s198 = sadd.s32 1, %s194
                $region56: #{_lambda_.1} parent=42 // loop_footer_branch
                  %193 = sbr.rel target = $region52
                $region57: #{_lambda_.1} parent=42 // loop_exit
                  _
              $region43: #{_lambda_.1} parent=27 // pred_fallthru
                _
            $region28: #{_lambda_.1} parent=23 // pred_fallthru
              _
            // Predicated region
            $region29: #{_lambda_.1} parent=23 // pred_check
              _
            $region30: #{_lambda_.1} parent=23 // pred_check_branch
              %162 = sbr.rel (0) target = $region32
            $region31: #{_lambda_.1} parent=23 // pred_region
              %s164 = ssub.s32 16, 1
              loop: start=0, step=1, limit=1
              $region33: #{_lambda_.1} parent=31 // loop_pre_header
                _
              $region34: #{_lambda_.1} parent=31 // loop_header
                %s166 = sphi 0, %s170
                %p167 = scmp.ge.s32.totalorder %s166, 1
                %s171 = sphi %s156, %s156
                %s172 = sphi %s144, %s144
              $region35: #{_lambda_.1} parent=31 // loop_header_branch
                %169 = sbr.rel (%p167) target = $region39
              $region36: #{_lambda_.1} parent=31 // loop_body
                %v173 = vld [vmem:[%s171] sm:%s164]
                %174 = vst [vmem:[%s172] sm:%s164] %v173
                %v175 = vld [vmem:[%s171 + $0x20] sm:%s164]
                %176 = vst [vmem:[%s172 + $0x4] sm:%s164] %v175
                %v177 = vld [vmem:[%s171 + $0x40] sm:%s164]
                %178 = vst [vmem:[%s172 + $0x8] sm:%s164] %v177
                %v179 = vld [vmem:[%s171 + $0x60] sm:%s164]
                %180 = vst [vmem:[%s172 + $0xc] sm:%s164] %v179
              $region37: #{_lambda_.1} parent=31 // loop_footer
                %s170 = sadd.s32 1, %s166
              $region38: #{_lambda_.1} parent=31 // loop_footer_branch
                %165 = sbr.rel target = $region34
              $region39: #{_lambda_.1} parent=31 // loop_exit
                _
            $region32: #{_lambda_.1} parent=23 // pred_fallthru
              _
          $region24: #{_lambda_.1} parent=19 // pred_fallthru
            _
          %209 = vnop
        $region20: #{_lambda_.1} parent=15 // pred_fallthru
          _
      $region16: #{_lambda_.1} parent=5 // pred_fallthru
        _
      %p210 = scmp.le.s32.totalorder 1, %s7
      %p211 = scmp.lt.s32.totalorder %s7, 17
      %p212 = pnand %p210, %p211
      %p213 = pneg %p212
      // Predicated region
      $region58: #{_lambda_.1} parent=5 // pred_check
        _
      $region59: #{_lambda_.1} parent=5 // pred_check_branch
        %215 = sbr.rel (%p212) target = $region61
      $region60: #{_lambda_.1} parent=5 // pred_region
        %s216 = ssub.s32 %s7, 1
        %s217 = sand.u32 %s70, 1
        %s218 = sand.u32 %s70, 1
        %s219 = smul.addr %s218, 16
        %s220 = scalar_lea.vmem [#allocation2], %s219
        // Predicated region
        $region62: #{_lambda_.1} parent=60 // pred_check
          %p221 = pneg %p83
        $region63: #{_lambda_.1} parent=60 // pred_check_branch
          %223 = sbr.rel (%p221) target = $region65
        $region64: #{_lambda_.1} parent=60 // pred_region
          _
        $region65: #{_lambda_.1} parent=60 // pred_fallthru
          _
        %s224 = sand.u32 %s70, 1
        %s225 = sand.u32 %s70, 1
        %s226 = smul.addr %s225, 16
        %s227 = scalar_lea.vmem [#allocation2], %s226
        %p228 = pneg %p83
        %p229 = pneg %p80
        %p230 = pneg %p119
        %p231 = pneg %p116
        %s232 = smul.u32 4, %s24
        %p233 = scmp.lt.s32.totalorder %s20, 1
        %s234 = scalar_select %p233, %s20, 1
        %p235 = scmp.lt.s32.totalorder %s21, 1
        %s236 = scalar_select %p235, %s21, 1
        %p237 = scmp.lt.s32.totalorder %s22, 1
        %s238 = scalar_select %p237, %s22, 1
        %p239 = scmp.lt.s32.totalorder %s23, 1
        %s240 = scalar_select %p239, %s23, 1
        %p241 = scmp.lt.s32.totalorder %s232, 3
        %s242 = scalar_select %p241, %s232, 3
        %p243 = scmp.lt.s32.totalorder %s25, 0
        %s244 = scalar_select %p243, %s25, 0
        %s245 = sadd.s32 %s244, %s242
        %s246 = smul.addr %s240, 4
        %s247 = sadd.s32 %s245, %s246
        %s248 = smul.addr %s238, 8
        %s249 = sadd.s32 %s247, %s248
        %s250 = smul.addr %s236, 16
        %s251 = sadd.s32 %s249, %s250
        %s252 = smul.addr %s234, 32
        %s253 = sadd.s32 %s251, %s252
        %s254 = smul.addr %s253, 4
        %s255 = scalar_lea.vmem %s1, %s254
        %s256 = smul.u32 4, %s24
        %s257 = smul.u32 4, %s24
        %p258 = scmp.lt.s32.totalorder %s20, 1
        %s259 = scalar_select %p258, %s20, 1
        %p260 = scmp.lt.s32.totalorder %s21, 1
        %s261 = scalar_select %p260, %s21, 1
        %p262 = scmp.lt.s32.totalorder %s22, 1
        %s263 = scalar_select %p262, %s22, 1
        %p264 = scmp.lt.s32.totalorder %s23, 1
        %s265 = scalar_select %p264, %s23, 1
        %p266 = scmp.lt.s32.totalorder %s257, 3
        %s267 = scalar_select %p266, %s257, 3
        %p268 = scmp.lt.s32.totalorder %s25, 0
        %s269 = scalar_select %p268, %s25, 0
        %s270 = sadd.s32 %s269, %s267
        %s271 = smul.addr %s265, 4
        %s272 = sadd.s32 %s270, %s271
        %s273 = smul.addr %s263, 8
        %s274 = sadd.s32 %s272, %s273
        %s275 = smul.addr %s261, 16
        %s276 = sadd.s32 %s274, %s275
        %s277 = smul.addr %s259, 32
        %s278 = sadd.s32 %s276, %s277
        %s279 = smul.addr %s278, 4
        %s280 = scalar_lea.vmem %s1, %s279
        %s281 = smul.u32 4, %s24
        %v282 = vld [vmem:[%s220] sm:$0xf]
        %v283 = vld [vmem:[%s220 + $0x4] sm:$0xf]
        %v284 = vld [vmem:[%s220 + $0x8] sm:$0xf]
        %v285 = vld [vmem:[%s220 + $0xc] sm:$0xf]
        %vm286 = vcmask 125952
        %287 = vst.msk [vmem:[%s280] sm:$0xf] %vm286, %v282
        %288 = vst.msk [vmem:[%s280 + $0x4] sm:$0xf] %vm286, %v283
        %289 = vst.msk [vmem:[%s280 + $0x8] sm:$0xf] %vm286, %v284
        %290 = vst.msk [vmem:[%s280 + $0xc] sm:$0xf] %vm286, %v285
        %s291 = smul.u32 4, %s24
        %p292 = scmp.lt.s32.totalorder %s20, 1
        %s293 = scalar_select %p292, %s20, 1
        %p294 = scmp.lt.s32.totalorder %s21, 1
        %s295 = scalar_select %p294, %s21, 1
        %p296 = scmp.lt.s32.totalorder %s22, 1
        %s297 = scalar_select %p296, %s22, 1
        %p298 = scmp.lt.s32.totalorder %s23, 1
        %s299 = scalar_select %p298, %s23, 1
        %p300 = scmp.lt.s32.totalorder %s291, 3
        %s301 = scalar_select %p300, %s291, 3
        %p302 = scmp.lt.s32.totalorder %s25, 0
        %s303 = scalar_select %p302, %s25, 0
        %s304 = sadd.s32 %s303, %s301
        %s305 = smul.addr %s299, 4
        %s306 = sadd.s32 %s304, %s305
        %s307 = smul.addr %s297, 8
        %s308 = sadd.s32 %s306, %s307
        %s309 = smul.addr %s295, 16
        %s310 = sadd.s32 %s308, %s309
        %s311 = smul.addr %s293, 32
        %s312 = sadd.s32 %s310, %s311
        %s313 = smul.addr %s312, 4
        %s314 = scalar_lea.vmem %s1, %s313
        // Predicated region
        $region66: #{_lambda_.1} parent=60 // pred_check
          %p315 = pneg %p116
        $region67: #{_lambda_.1} parent=60 // pred_check_branch
          %317 = sbr.rel (%p315) target = $region69
        $region68: #{_lambda_.1} parent=60 // pred_region
          %s318 = smul.u32 4, %s24
        $region69: #{_lambda_.1} parent=60 // pred_fallthru
          _
      $region61: #{_lambda_.1} parent=5 // pred_fallthru
        _
      %p319 = scmp.le.s32.totalorder 2, %s7
      // Predicated region
      $region70: #{_lambda_.1} parent=5 // pred_check
        %p320 = pneg %p319
      $region71: #{_lambda_.1} parent=5 // pred_check_branch
        %322 = sbr.rel (%p320) target = $region73
      $region72: #{_lambda_.1} parent=5 // pred_region
        %s323 = ssub.s32 %s7, 2
        // Predicated region
        $region74: #{_lambda_.1} parent=72 // pred_check
          %p324 = pneg %p122
        $region75: #{_lambda_.1} parent=72 // pred_check_branch
          %326 = sbr.rel (%p324) target = $region77
        $region76: #{_lambda_.1} parent=72 // pred_region
          %s327 = smul.u32 4, %s30
          %p328 = scmp.lt.s32.totalorder %s26, 1
          %s329 = scalar_select %p328, %s26, 1
          %p330 = scmp.lt.s32.totalorder %s27, 1
          %s331 = scalar_select %p330, %s27, 1
          %p332 = scmp.lt.s32.totalorder %s28, 1
          %s333 = scalar_select %p332, %s28, 1
          %p334 = scmp.lt.s32.totalorder %s29, 1
          %s335 = scalar_select %p334, %s29, 1
          %p336 = scmp.lt.s32.totalorder %s327, 3
          %s337 = scalar_select %p336, %s327, 3
          %p338 = scmp.lt.s32.totalorder %s31, 0
          %s339 = scalar_select %p338, %s31, 0
          %s340 = sadd.s32 %s339, %s337
          %s341 = smul.addr %s335, 4
          %s342 = sadd.s32 %s340, %s341
          %s343 = smul.addr %s333, 8
          %s344 = sadd.s32 %s342, %s343
          %s345 = smul.addr %s331, 16
          %s346 = sadd.s32 %s344, %s345
          %s347 = smul.addr %s329, 32
          %s348 = sadd.s32 %s346, %s347
          %s349 = smul.addr %s348, 4
          %s350 = scalar_lea.vmem %s1, %s349
        $region77: #{_lambda_.1} parent=72 // pred_fallthru
          _
      $region73: #{_lambda_.1} parent=5 // pred_fallthru
        _
    $region6: #{_lambda_.1} parent=1 // loop_footer
      %s11 = sadd.s32 1, %s7
    $region7: #{_lambda_.1} parent=1 // loop_footer_branch
      %6 = sbr.rel target = $region3
    $region8: #{_lambda_.1} parent=1 // loop_exit
      _

</llo_original>
